<compile_context>
chip_gen: v7x
topology: tpu7x:2x2x1
jax: 0.10.0
libtpu: 0.0.40
codegen_flags: <defaults>
</compile_context>

<pallas_src>
import jax
import jax.numpy as jnp
from jax import lax
from jax.experimental import pallas as pl
from jax.experimental.pallas import tpu as pltpu

_LN_EPS = 1e-5  # PyTorch nn.LayerNorm default


# ---------------------------------------------------------------------------
# Pallas kernel: fused (transpose + LayerNorm) on one token tile.
# ---------------------------------------------------------------------------
def _patch_embed_ln_kernel(x_ref, g_ref, b_ref, o_ref):
    """
    x_ref: (1, C, TOK) tile of the (B, C, HW) input (native NCHW-flat layout).
    g_ref, b_ref: (C, 1) affine LayerNorm params.
    o_ref: (1, TOK, C) tile of the (B, HW, C) token-major output.
    """
    x = x_ref[0].astype(jnp.float32)                    # (C, TOK); lanes = tokens
    c = x.shape[0]
    inv_c = 1.0 / c

    # One-pass statistics over the channel (sublane) axis.
    mean = jnp.sum(x, axis=0, keepdims=True) * inv_c            # (1, TOK)
    mean_sq = jnp.sum(x * x, axis=0, keepdims=True) * inv_c     # (1, TOK)
    var = jnp.maximum(mean_sq - mean * mean, 0.0)
    inv = lax.rsqrt(var + _LN_EPS)                              # (1, TOK)

    g = g_ref[...].astype(jnp.float32)                          # (C, 1)
    b = b_ref[...].astype(jnp.float32)                          # (C, 1)
    y = (x - mean) * inv * g + b                                # (C, TOK) lane-dense

    # Single XLU transpose per tile -> token-major layout for the store.
    o_ref[0] = jnp.transpose(y).astype(o_ref.dtype)             # (TOK, C)


# ---------------------------------------------------------------------------
# Tiling helpers.
# ---------------------------------------------------------------------------
def _round_up(x, m):
    return ((x + m - 1) // m) * m


def _choose_token_tile(num_tokens, c):
    """Largest token tile (multiple of 128, capped at 1024) whose per-step
    working set (~8 live C*TOK f32 slabs: double-buffered in/out blocks plus
    in-kernel f32 temporaries) stays inside a conservative VMEM budget that
    fits v5e / v6e / v7x scoped VMEM."""
    budget_bytes = 8 * 1024 * 1024
    per_token_bytes = 8 * c * 4
    tok = max(128, (budget_bytes // per_token_bytes) // 128 * 128)
    tok = min(tok, 1024)
    tok = min(tok, _round_up(num_tokens, 128))
    return tok


# ---------------------------------------------------------------------------
# PatchEmbed forward (wrapper around the fused Pallas kernel).
# ---------------------------------------------------------------------------
def patch_embed_forward(x_nchw, gamma=None, beta=None):
    """
    x_nchw: (B, C, H, W) as in PyTorch NCHW.
    Returns (B, H*W, C), optionally LayerNorm'd over C (if gamma/beta given),
    matching PatchEmbed.forward.
    """
    b, c, h, w = x_nchw.shape
    hw = h * w
    x3 = x_nchw.reshape(b, c, hw)          # free reshape; stays in native layout

    if gamma is None:
        # norm_layer=None branch: pure layout change, nothing to compute.
        return jnp.transpose(x3, (0, 2, 1))

    tok = _choose_token_tile(hw, c)
    hw_pad = _round_up(hw, tok)
    if hw_pad != hw:
        # Padded tokens normalize zeros (finite output) and are sliced away.
        x3 = jnp.pad(x3, ((0, 0), (0, 0), (0, hw_pad - hw)))

    g2 = gamma.reshape(c, 1)
    b2 = beta.reshape(c, 1)

    out = pl.pallas_call(
        _patch_embed_ln_kernel,
        out_shape=jax.ShapeDtypeStruct((b, hw_pad, c), x_nchw.dtype),
        grid_spec=pltpu.PrefetchScalarGridSpec(
            num_scalar_prefetch=0,
            grid=(b, hw_pad // tok),
            in_specs=[
                pl.BlockSpec((1, c, tok), lambda bi, ti: (bi, 0, ti)),
                pl.BlockSpec((c, 1), lambda bi, ti: (0, 0)),
                pl.BlockSpec((c, 1), lambda bi, ti: (0, 0)),
            ],
            out_specs=pl.BlockSpec((1, tok, c), lambda bi, ti: (bi, ti, 0)),
        ),
        compiler_params=pltpu.CompilerParams(
            dimension_semantics=("parallel", "parallel"),
            vmem_limit_bytes=32 * 1024 * 1024,
        ),
    )(x3, g2, b2)

    if hw_pad != hw:
        out = out[:, :hw, :]
    return out


# ---------------------------------------------------------------------------
# Pure-JAX reference (two-pass LayerNorm), for correctness checking only.
# ---------------------------------------------------------------------------
def _reference(x_nchw, gamma, beta):
    b, c, h, w = x_nchw.shape
    x = jnp.transpose(x_nchw.reshape(b, c, h * w), (0, 2, 1)).astype(jnp.float32)
    mean = jnp.mean(x, axis=-1, keepdims=True)
    var = jnp.mean((x - mean) ** 2, axis=-1, keepdims=True)
    y = (x - mean) * lax.rsqrt(var + _LN_EPS) * gamma + beta
    return y.astype(x_nchw.dtype)


if __name__ == "__main__":
    # Shapes consistent with the module: img_size=64, patch_size=4 ->
    # patches_resolution = 16x16 (256 tokens), embed_dim=32,
    # norm_layer=LayerNorm(embed_dim). forward expects x already shaped
    # (B, embed_dim, Hp, Wp).
    B, EMBED, HP, WP = 2, 32, 16, 16

    key = jax.random.PRNGKey(0)
    x = jax.random.normal(key, (B, EMBED, HP, WP), dtype=jnp.float32)

    # Deterministic synthetic affine LayerNorm parameters.
    gamma = 1.0 + 0.01 * jnp.arange(EMBED, dtype=jnp.float32)
    beta = 0.02 * jnp.arange(EMBED, dtype=jnp.float32) - 0.1

    # Main case: 256 tokens (multiple of the 128-token tile, no padding).
    out = jax.block_until_ready(patch_embed_forward(x, gamma, beta))
    assert out.shape == (B, HP * WP, EMBED)
    ref = _reference(x, gamma, beta)
    assert jnp.allclose(out, ref, atol=1e-4, rtol=1e-5), float(
        jnp.max(jnp.abs(out - ref))
    )

    # Ragged case: 25 tokens (not a multiple of the tile) -> pad + slice path.
    x2 = jax.random.normal(jax.random.PRNGKey(0), (B, EMBED, 5, 5), jnp.float32)
    out2 = jax.block_until_ready(patch_embed_forward(x2, gamma, beta))
    assert out2.shape == (B, 25, EMBED)
    ref2 = _reference(x2, gamma, beta)
    assert jnp.allclose(out2, ref2, atol=1e-4, rtol=1e-5), float(
        jnp.max(jnp.abs(out2 - ref2))
    )

    # norm_layer=None branch: pure layout change, done in plain JAX.
    out3 = jax.block_until_ready(patch_embed_forward(x))
    assert out3.shape == (B, HP * WP, EMBED)

    print("KERNEL_OK")
</pallas_src>

<mosaic_0001>
module attributes {stable_mosaic.version = 11 : i64} {
  func.func @_patch_embed_ln_kernel(%arg0: i32, %arg1: i32, %arg2: memref<1x32x256xf32, #tpu.memory_space<vmem>>, %arg3: memref<32x1xf32, #tpu.memory_space<vmem>>, %arg4: memref<32x1xf32, #tpu.memory_space<vmem>>, %arg5: memref<1x256x32xf32, #tpu.memory_space<vmem>>) attributes {dimension_semantics = [#tpu.dimension_semantics<parallel>, #tpu.dimension_semantics<parallel>], iteration_bounds = array<i64: 2, 1>, scalar_prefetch = 0 : i64, scratch_operands = 0 : i64, tpu.core_type = #tpu.core_type<tc>, window_params = [{transform_indices = @transform_0, window_bounds = array<i64: 1, 32, 256>}, {pipeline_mode = #tpu.pipeline_mode<synchronous>, transform_indices = @transform_1, window_bounds = array<i64: 32, 1>}, {pipeline_mode = #tpu.pipeline_mode<synchronous>, transform_indices = @transform_2, window_bounds = array<i64: 32, 1>}, {transform_indices = @transform_3, window_bounds = array<i64: 1, 256, 32>}]} {
    %c0 = arith.constant 0 : index
    %c0_0 = arith.constant 0 : index
    %c0_1 = arith.constant 0 : index
    %0 = vector.load %arg2[%c0, %c0_0, %c0_1] : memref<1x32x256xf32, #tpu.memory_space<vmem>>, vector<1x32x256xf32>
    %1 = vector.shape_cast %0 : vector<1x32x256xf32> to vector<32x256xf32>
    %cst = arith.constant dense<0.000000e+00> : vector<256xf32>
    %2 = vector.multi_reduction <add>, %1, %cst [0] : vector<32x256xf32> to vector<256xf32>
    %3 = vector.shape_cast %2 : vector<256xf32> to vector<1x256xf32>
    %cst_2 = arith.constant 3.125000e-02 : f32
    %4 = vector.broadcast %cst_2 : f32 to vector<1x256xf32>
    %5 = arith.mulf %3, %4 : vector<1x256xf32>
    %6 = arith.mulf %1, %1 : vector<32x256xf32>
    %cst_3 = arith.constant dense<0.000000e+00> : vector<256xf32>
    %7 = vector.multi_reduction <add>, %6, %cst_3 [0] : vector<32x256xf32> to vector<256xf32>
    %8 = vector.shape_cast %7 : vector<256xf32> to vector<1x256xf32>
    %cst_4 = arith.constant 3.125000e-02 : f32
    %9 = vector.broadcast %cst_4 : f32 to vector<1x256xf32>
    %10 = arith.mulf %8, %9 : vector<1x256xf32>
    %11 = arith.mulf %5, %5 : vector<1x256xf32>
    %12 = arith.subf %10, %11 : vector<1x256xf32>
    %cst_5 = arith.constant 0.000000e+00 : f32
    %13 = vector.broadcast %cst_5 : f32 to vector<1x256xf32>
    %14 = arith.maximumf %12, %13 : vector<1x256xf32>
    %cst_6 = arith.constant 9.99999974E-6 : f32
    %15 = vector.broadcast %cst_6 : f32 to vector<1x256xf32>
    %16 = arith.addf %14, %15 : vector<1x256xf32>
    %17 = math.rsqrt %16 : vector<1x256xf32>
    %c0_7 = arith.constant 0 : index
    %c0_8 = arith.constant 0 : index
    %18 = vector.load %arg3[%c0_7, %c0_8] : memref<32x1xf32, #tpu.memory_space<vmem>>, vector<32x1xf32>
    %c0_9 = arith.constant 0 : index
    %c0_10 = arith.constant 0 : index
    %19 = vector.load %arg4[%c0_9, %c0_10] : memref<32x1xf32, #tpu.memory_space<vmem>>, vector<32x1xf32>
    %20 = vector.broadcast %5 : vector<1x256xf32> to vector<32x256xf32>
    %21 = arith.subf %1, %20 : vector<32x256xf32>
    %22 = vector.broadcast %17 : vector<1x256xf32> to vector<32x256xf32>
    %23 = arith.mulf %21, %22 : vector<32x256xf32>
    %24 = vector.broadcast %18 : vector<32x1xf32> to vector<32x256xf32>
    %25 = arith.mulf %23, %24 : vector<32x256xf32>
    %26 = vector.broadcast %19 : vector<32x1xf32> to vector<32x256xf32>
    %27 = arith.addf %25, %26 : vector<32x256xf32>
    %28 = tpu.transpose %27, [1, 0] : vector<32x256xf32> -> vector<256x32xf32>
    %c0_11 = arith.constant 0 : index
    %c0_12 = arith.constant 0 : index
    %c0_13 = arith.constant 0 : index
    %29 = vector.load %arg5[%c0_11, %c0_12, %c0_13] : memref<1x256x32xf32, #tpu.memory_space<vmem>>, vector<1x256x32xf32>
    %30 = vector.shape_cast %29 : vector<1x256x32xf32> to vector<256x32xf32>
    %31 = vector.shape_cast %28 : vector<256x32xf32> to vector<1x256x32xf32>
    tpu.vector_store %arg5[%c0_11, %c0_12, %c0_13], %31 {strides = array<i32>} : memref<1x256x32xf32, #tpu.memory_space<vmem>>, vector<1x256x32xf32>,
    return
  }
  func.func @transform_0(%arg0: i32, %arg1: i32) -> (i32, i32, i32) {
    %c0_i32 = arith.constant 0 : i32
    %c0_i32_0 = arith.constant 0 : i32
    return %arg0, %c0_i32, %arg1 : i32, i32, i32
  }
  func.func @transform_1(%arg0: i32, %arg1: i32) -> (i32, i32) {
    %c0_i32 = arith.constant 0 : i32
    %c0_i32_0 = arith.constant 0 : i32
    %c0_i32_1 = arith.constant 0 : i32
    return %c0_i32, %c0_i32_0 : i32, i32
  }
  func.func @transform_2(%arg0: i32, %arg1: i32) -> (i32, i32) {
    %c0_i32 = arith.constant 0 : i32
    %c0_i32_0 = arith.constant 0 : i32
    %c0_i32_1 = arith.constant 0 : i32
    return %c0_i32, %c0_i32_0 : i32, i32
  }
  func.func @transform_3(%arg0: i32, %arg1: i32) -> (i32, i32, i32) {
    %c0_i32 = arith.constant 0 : i32
    %c0_i32_0 = arith.constant 0 : i32
    return %arg0, %arg1, %c0_i32 : i32, i32, i32
  }
}

</mosaic_0001>

<llo_original>
// kernel: tpu_custom_call.1
$region0: #{tpu_custom_call.1}
  #allocation0 [shape = 'u32[]', space=smem, size = 0x4, offset = 0x4, fixed_abs, tag = 'smem constant byte address 0x4 - core index']
  #allocation1 [shape = 'u32[144,128]{1,0:T(1,128)}', space=vmem, size = 0x12000, scoped, tag = 'internal scratch']
  %s0 = inlined_call_operand.hbm [shape: f32[2,32,256], index: 0, kind: input, shape index: {}]
  %s1 = inlined_call_operand.vmem [shape: f32[32,1], index: 1, kind: input, shape index: {}]
  %s2 = inlined_call_operand.vmem [shape: f32[32,1], index: 2, kind: input, shape index: {}]
  %s3 = inlined_call_operand.vmem [shape: f32[2,256,32], index: 3, kind: output, shape index: {}]
  %s4 = sld [smem:[#allocation0]]
  $region49: #{tpu_custom_call.1} parent=0
    _
  %s6 = ssub.s32 1, %s4
  %s7 = scalar_select 0, %s6, %s4
  $region1: #{tpu_custom_call.1} parent=0
    #allocation2 [shape = 'u8[65536]{0}', space=vmem, size = 0x10000, scoped, tag = 'input window, operand 0']
    #allocation3 [shape = 's32[2]{0}', space=sflag, size = 0x8, scoped, tag = 'scoped memory for tpu_custom_call.1']
    %8 = vsyncpa [#allocation3], 0
    %s9 = scalar_lea.sflag [#allocation3], 1
    %10 = vsyncpa %s9, 0
    loop: start=0, step=1, limit=4
    $region2: #{tpu_custom_call.1} parent=1 // loop_pre_header
      _
    $region3: #{tpu_custom_call.1} parent=1 // loop_header
      %s12 = sphi 0, %s16
      %p13 = scmp.ge.s32.totalorder %s12, 4
      %s19 = sphi 0, %s31
      %s20 = sphi 0, %s27
      %s21 = sphi 0, %s19
      %s22 = sphi 0, %s20
      %s23 = sphi 0, %s21
      %s24 = sphi 0, %s22
      %s36 = sphi 0, %s38
      %s39 = sphi 0, %s36
      %s40 = sphi 0, %s39
      %s56 = sphi 0, %s40
      %s60 = sphi 0, %s60
      %s62 = sphi 0, %s60
      %s63 = sphi 0, %s62
      %s77 = sphi 0, %s63
      %s81 = sphi 0, %s81
      %s83 = sphi 0, %s81
      %s84 = sphi 0, %s83
      %s98 = sphi 0, %s84
      %s106 = sphi 0, %s108
      %s109 = sphi 0, %s106
      %s110 = sphi 0, %s109
      %s126 = sphi 0, %s110
    $region4: #{tpu_custom_call.1} parent=1 // loop_header_branch
      %15 = sbr.rel (%p13) target = $region8
    $region5: #{tpu_custom_call.1} parent=1 // loop_body
      %s17 = ssub.s32 %s12, 1
      %s18 = ssub.s32 %s12, 2
      %s25 = sadd.s32 1, %s20
      %p26 = scmp.ge.s32.totalorder %s25, 1
      %s27 = scalar_select %p26, 0, %s25
      %s28 = sadd.s32 1, %s19
      %s29 = scalar_select %p26, %s28, %s19
      %p30 = scmp.ge.s32.totalorder %s29, 2
      %s31 = scalar_select %p30, 0, %s29
      %s32 = ssub.s32 %s19, %s31
      %s33 = ssub.s32 %s20, %s27
      %s34 = sor.u32 %s32, %s33
      %p35 = scmp.eq.s32.totalorder %s34, 0
      %s37 = sadd.s32 %s36, 1
      %s38 = scalar_select %p35, %s36, %s37
      %p41 = pneg %p35
      %p42 = scmp.eq.s32.totalorder %s12, 1
      %p43 = por %p41, %p42
      %p44 = scmp.ne.s32.totalorder %s36, %s39
      %p45 = scmp.eq.s32.totalorder %s12, 0
      %p46 = por %p44, %p45
      %p47 = scmp.ne.s32.totalorder %s36, %s39
      %p48 = scmp.eq.s32.totalorder %s17, 1
      %p49 = por %p47, %p48
      %p50 = scmp.ne.s32.totalorder %s39, %s40
      %p51 = scmp.eq.s32.totalorder %s17, 0
      %p52 = por %p50, %p51
      %p53 = scmp.ne.s32.totalorder %s39, %s40
      %p54 = scmp.eq.s32.totalorder %s18, 1
      %p55 = por %p53, %p54
      %p57 = scmp.ne.s32.totalorder %s40, %s56
      %p58 = scmp.eq.s32.totalorder %s18, 0
      %p59 = por %p57, %p58
      %s61 = sadd.s32 %s60, 1
      %p64 = scmp.eq.s32.totalorder %s12, 1
      %p65 = scmp.ne.s32.totalorder %s60, %s62
      %p66 = scmp.eq.s32.totalorder %s12, 0
      %p67 = por %p65, %p66
      %p68 = scmp.ne.s32.totalorder %s60, %s62
      %p69 = scmp.eq.s32.totalorder %s17, 1
      %p70 = por %p68, %p69
      %p71 = scmp.ne.s32.totalorder %s62, %s63
      %p72 = scmp.eq.s32.totalorder %s17, 0
      %p73 = por %p71, %p72
      %p74 = scmp.ne.s32.totalorder %s62, %s63
      %p75 = scmp.eq.s32.totalorder %s18, 1
      %p76 = por %p74, %p75
      %p78 = scmp.ne.s32.totalorder %s63, %s77
      %p79 = scmp.eq.s32.totalorder %s18, 0
      %p80 = por %p78, %p79
      %s82 = sadd.s32 %s81, 1
      %p85 = scmp.eq.s32.totalorder %s12, 1
      %p86 = scmp.ne.s32.totalorder %s81, %s83
      %p87 = scmp.eq.s32.totalorder %s12, 0
      %p88 = por %p86, %p87
      %p89 = scmp.ne.s32.totalorder %s81, %s83
      %p90 = scmp.eq.s32.totalorder %s17, 1
      %p91 = por %p89, %p90
      %p92 = scmp.ne.s32.totalorder %s83, %s84
      %p93 = scmp.eq.s32.totalorder %s17, 0
      %p94 = por %p92, %p93
      %p95 = scmp.ne.s32.totalorder %s83, %s84
      %p96 = scmp.eq.s32.totalorder %s18, 1
      %p97 = por %p95, %p96
      %p99 = scmp.ne.s32.totalorder %s84, %s98
      %p100 = scmp.eq.s32.totalorder %s18, 0
      %p101 = por %p99, %p100
      %s102 = ssub.s32 %s19, %s31
      %s103 = ssub.s32 %s20, %s27
      %s104 = sor.u32 %s102, %s103
      %p105 = scmp.eq.s32.totalorder %s104, 0
      %s107 = sadd.s32 %s106, 1
      %s108 = scalar_select %p105, %s106, %s107
      %p111 = pneg %p105
      %p112 = scmp.eq.s32.totalorder %s12, 1
      %p113 = por %p111, %p112
      %p114 = scmp.ne.s32.totalorder %s106, %s109
      %p115 = scmp.eq.s32.totalorder %s12, 0
      %p116 = por %p114, %p115
      %p117 = scmp.ne.s32.totalorder %s106, %s109
      %p118 = scmp.eq.s32.totalorder %s17, 1
      %p119 = por %p117, %p118
      %p120 = scmp.ne.s32.totalorder %s109, %s110
      %p121 = scmp.eq.s32.totalorder %s17, 0
      %p122 = por %p120, %p121
      %p123 = scmp.ne.s32.totalorder %s109, %s110
      %p124 = scmp.eq.s32.totalorder %s18, 1
      %p125 = por %p123, %p124
      %p127 = scmp.ne.s32.totalorder %s110, %s126
      %p128 = scmp.eq.s32.totalorder %s18, 0
      %p129 = por %p127, %p128
      %p130 = scmp.le.s32.totalorder 1, %s12
      %p131 = scmp.lt.s32.totalorder %s12, 3
      %p132 = pnand %p130, %p131
      %p133 = pneg %p132
      // Predicated region
      $region9: #{tpu_custom_call.1} parent=5 // pred_check
        _
      $region10: #{tpu_custom_call.1} parent=5 // pred_check_branch
        %135 = sbr.rel (%p132) target = $region12
      $region11: #{tpu_custom_call.1} parent=5 // pred_region
        %s136 = ssub.s32 %s12, 1
        // Predicated region
        $region13: #{tpu_custom_call.1} parent=11 // pred_check
          %p137 = pneg %p73
        $region14: #{tpu_custom_call.1} parent=11 // pred_check_branch
          %139 = sbr.rel (%p137) target = $region16
        $region15: #{tpu_custom_call.1} parent=11 // pred_region
          _
        $region16: #{tpu_custom_call.1} parent=11 // pred_fallthru
          _
        // Predicated region
        $region17: #{tpu_custom_call.1} parent=11 // pred_check
          %p140 = pneg %p94
        $region18: #{tpu_custom_call.1} parent=11 // pred_check_branch
          %142 = sbr.rel (%p140) target = $region20
        $region19: #{tpu_custom_call.1} parent=11 // pred_region
          _
        $region20: #{tpu_custom_call.1} parent=11 // pred_fallthru
          _
      $region12: #{tpu_custom_call.1} parent=5 // pred_fallthru
        _
      %p143 = scmp.lt.s32.totalorder %s12, 2
      // Predicated region
      $region21: #{tpu_custom_call.1} parent=5 // pred_check
        %p144 = pneg %p143
      $region22: #{tpu_custom_call.1} parent=5 // pred_check_branch
        %146 = sbr.rel (%p144) target = $region24
      $region23: #{tpu_custom_call.1} parent=5 // pred_region
        // Predicated region
        $region25: #{tpu_custom_call.1} parent=23 // pred_check
          %p147 = pneg %p46
        $region26: #{tpu_custom_call.1} parent=23 // pred_check_branch
          %149 = sbr.rel (%p147) target = $region28
        $region27: #{tpu_custom_call.1} parent=23 // pred_region
          %s150 = sand.u32 %s36, 1
          %s151 = scalar_lea.sflag [#allocation3], %s150
          %s152 = sand.u32 %s36, 1
          %s153 = smul.addr %s152, 64
          %s154 = scalar_lea.vmem [#allocation2], %s153
          %s155 = smul.u32 2, %s20
          %s157 = ssub.s32 1024, 1024
          %158 = vsyncadd %s151, %s157
          %s159 = smul.addr %s19, 8
          %s160 = sadd.s32 %s155, %s159
          %s161 = smul.addr %s160, 128
          %s162 = scalar_lea.hbm %s0, %s161
          %s163 = sshll.u32 %s154, 4
          %s164 = int_to_ptr.vmem [resolvable:$true] %s163
          %169 = dma.hbm_to_vmem [thread:$0]  %s162, 1024, %s164, %s151, 256, 256, 16
        $region28: #{tpu_custom_call.1} parent=23 // pred_fallthru
          _
      $region24: #{tpu_custom_call.1} parent=5 // pred_fallthru
        _
      %p170 = scmp.le.s32.totalorder 1, %s12
      %p171 = scmp.lt.s32.totalorder %s12, 3
      %p172 = pnand %p170, %p171
      %p173 = pneg %p172
      // Predicated region
      $region29: #{tpu_custom_call.1} parent=5 // pred_check
        _
      $region30: #{tpu_custom_call.1} parent=5 // pred_check_branch
        %175 = sbr.rel (%p172) target = $region32
      $region31: #{tpu_custom_call.1} parent=5 // pred_region
        %s176 = ssub.s32 %s12, 1
        %s177 = sand.u32 %s39, 1
        %s178 = scalar_lea.sflag [#allocation3], %s177
        %s179 = sand.u32 %s39, 1
        %s180 = smul.addr %s179, 64
        %s181 = scalar_lea.vmem [#allocation2], %s180
        // Predicated region
        $region33: #{tpu_custom_call.1} parent=31 // pred_check
          %p182 = pneg %p52
        $region34: #{tpu_custom_call.1} parent=31 // pred_check_branch
          %184 = sbr.rel (%p182) target = $region36
        $region35: #{tpu_custom_call.1} parent=31 // pred_region
          %185 = dma.done %s178, 1024
        $region36: #{tpu_custom_call.1} parent=31 // pred_fallthru
          _
        %s186 = sand.u32 %s39, 1
        %s187 = scalar_lea.sflag [#allocation3], %s186
        %s188 = sand.u32 %s39, 1
        %s189 = smul.addr %s188, 64
        %s190 = scalar_lea.vmem [#allocation2], %s189
        %p191 = pneg %p52
        %p192 = pneg %p49
        %p193 = pneg %p73
        %p194 = pneg %p70
        %p195 = pneg %p94
        %p196 = pneg %p91
        %p197 = pneg %p122
        %p198 = pneg %p119
        %s199 = smul.u32 32, %s22
        %p200 = scmp.lt.s32.totalorder %s21, 1
        %s201 = scalar_select %p200, %s21, 1
        %p202 = scmp.lt.s32.totalorder %s199, 31
        %s203 = scalar_select %p202, %s199, 31
        %s204 = smul.addr %s201, 32
        %s205 = sadd.s32 %s203, %s204
        %s206 = smul.addr %s205, 8
        %s207 = scalar_lea.vmem %s3, %s206
        %s208 = smul.u32 2, %s22
        %s209 = smul.u32 32, %s22
        %p210 = scmp.lt.s32.totalorder %s21, 1
        %s211 = scalar_select %p210, %s21, 1
        %p212 = scmp.lt.s32.totalorder %s209, 31
        %s213 = scalar_select %p212, %s209, 31
        %s214 = smul.addr %s211, 32
        %s215 = sadd.s32 %s213, %s214
        %s216 = smul.addr %s215, 8
        %s217 = scalar_lea.vmem %s3, %s216
        %s218 = smul.u32 32, %s22
        %v219 = vld [vmem:[%s181] sm:$0xff]
        %v220 = vld [vmem:[%s181 + $0x8] sm:$0xff]
        %v221 = vld [vmem:[%s181 + $0x10] sm:$0xff]
        %v222 = vld [vmem:[%s181 + $0x18] sm:$0xff]
        %v223 = vld [vmem:[%s181 + $0x20] sm:$0xff]
        %v224 = vld [vmem:[%s181 + $0x28] sm:$0xff]
        %v225 = vld [vmem:[%s181 + $0x30] sm:$0xff]
        %v226 = vld [vmem:[%s181 + $0x38] sm:$0xff]
        %v227 = vadd.f32 %v219, %v221
        %v228 = vadd.f32 %v227, %v223
        %v229 = vadd.f32 %v228, %v225
        %v230 = vrot.slane %v229, 4
        %v231 = vadd.f32 %v229, %v230
        %v232 = vrot.slane %v231, 2
        %v233 = vadd.f32 %v231, %v232
        %v234 = vrot.slane %v233, 1
        %v235 = vadd.f32 %v233, %v234
        %v236 = vadd.f32 %v220, %v222
        %v237 = vadd.f32 %v236, %v224
        %v238 = vadd.f32 %v237, %v226
        %v239 = vrot.slane %v238, 4
        %v240 = vadd.f32 %v238, %v239
        %v241 = vrot.slane %v240, 2
        %v242 = vadd.f32 %v240, %v241
        %v243 = vrot.slane %v242, 1
        %v244 = vadd.f32 %v242, %v243
        %v245 = vmul.f32 %v235, 0.03125
        %v246 = vmul.f32 %v244, 0.03125
        %v247 = vmul.f32 %v219, %v219
        %v248 = vmul.f32 %v220, %v220
        %v249 = vmul.f32 %v221, %v221
        %v250 = vmul.f32 %v222, %v222
        %v251 = vmul.f32 %v223, %v223
        %v252 = vmul.f32 %v224, %v224
        %v253 = vmul.f32 %v225, %v225
        %v254 = vmul.f32 %v226, %v226
        %v255 = vadd.f32 %v247, %v249
        %v256 = vadd.f32 %v255, %v251
        %v257 = vadd.f32 %v256, %v253
        %v258 = vrot.slane %v257, 4
        %v259 = vadd.f32 %v257, %v258
        %v260 = vrot.slane %v259, 2
        %v261 = vadd.f32 %v259, %v260
        %v262 = vrot.slane %v261, 1
        %v263 = vadd.f32 %v261, %v262
        %v264 = vadd.f32 %v248, %v250
        %v265 = vadd.f32 %v264, %v252
        %v266 = vadd.f32 %v265, %v254
        %v267 = vrot.slane %v266, 4
        %v268 = vadd.f32 %v266, %v267
        %v269 = vrot.slane %v268, 2
        %v270 = vadd.f32 %v268, %v269
        %v271 = vrot.slane %v270, 1
        %v272 = vadd.f32 %v270, %v271
        %v273 = vmul.f32 %v263, 0.03125
        %v274 = vmul.f32 %v272, 0.03125
        %v275 = vmul.f32 %v245, %v245
        %v276 = vmul.f32 %v246, %v246
        %v277 = vsub.f32 %v273, %v275
        %v278 = vsub.f32 %v274, %v276
        %v279 = vmax.f32 %v277, 0.0
        %v280 = vmax.f32 %v278, 0.0
        %v281 = vadd.f32 %v279, 1e-05
        %v282 = vadd.f32 %v280, 1e-05
        %v283 = vrsqrt.pop %v281
        %v284 = vrsqrt.pop %v282
        %v285 = vld [vmem:[%s1] sm:$0xff]
        %v286 = vld [vmem:[%s1 + $0x8] sm:$0xff]
        %v287 = vld [vmem:[%s1 + $0x10] sm:$0xff]
        %v288 = vld [vmem:[%s1 + $0x18] sm:$0xff]
        %v289 = vld [vmem:[%s2] sm:$0xff]
        %v290 = vld [vmem:[%s2 + $0x8] sm:$0xff]
        %v291 = vld [vmem:[%s2 + $0x10] sm:$0xff]
        %v292 = vld [vmem:[%s2 + $0x18] sm:$0xff]
        %v293 = vsub.f32 %v219, %v245
        %v294 = vsub.f32 %v220, %v246
        %v295 = vsub.f32 %v221, %v245
        %v296 = vsub.f32 %v222, %v246
        %v297 = vsub.f32 %v223, %v245
        %v298 = vsub.f32 %v224, %v246
        %v299 = vsub.f32 %v225, %v245
        %v300 = vsub.f32 %v226, %v246
        %v301 = vmul.f32 %v293, %v283
        %v302 = vmul.f32 %v294, %v284
        %v303 = vmul.f32 %v295, %v283
        %v304 = vmul.f32 %v296, %v284
        %v305 = vmul.f32 %v297, %v283
        %v306 = vmul.f32 %v298, %v284
        %v307 = vmul.f32 %v299, %v283
        %v308 = vmul.f32 %v300, %v284
        %310 = vset.pattern.permute.xlu0 0
        %311 = vperm.xlu0 %310, %v285
        %v312 = vpop.permute.xlu0 %311
        %315 = vset.pattern.permute.xlu0 0
        %316 = vperm.xlu0 %315, %v286
        %v317 = vpop.permute.xlu0 %316
        %320 = vset.pattern.permute.xlu0 0
        %321 = vperm.xlu0 %320, %v287
        %v322 = vpop.permute.xlu0 %321
        %325 = vset.pattern.permute.xlu0 0
        %326 = vperm.xlu0 %325, %v288
        %v327 = vpop.permute.xlu0 %326
        %v329 = vmul.f32 %v301, %v312
        %v330 = vmul.f32 %v302, %v312
        %v331 = vmul.f32 %v303, %v317
        %v332 = vmul.f32 %v304, %v317
        %v333 = vmul.f32 %v305, %v322
        %v334 = vmul.f32 %v306, %v322
        %v335 = vmul.f32 %v307, %v327
        %v336 = vmul.f32 %v308, %v327
        %338 = vset.pattern.permute.xlu0 0
        %339 = vperm.xlu0 %338, %v289
        %v340 = vpop.permute.xlu0 %339
        %343 = vset.pattern.permute.xlu0 0
        %344 = vperm.xlu0 %343, %v290
        %v345 = vpop.permute.xlu0 %344
        %348 = vset.pattern.permute.xlu0 0
        %349 = vperm.xlu0 %348, %v291
        %v350 = vpop.permute.xlu0 %349
        %353 = vset.pattern.permute.xlu0 0
        %354 = vperm.xlu0 %353, %v292
        %v355 = vpop.permute.xlu0 %354
        %v357 = vadd.f32 %v329, %v340
        %v358 = vadd.f32 %v330, %v340
        %v359 = vadd.f32 %v331, %v345
        %v360 = vadd.f32 %v332, %v345
        %v361 = vadd.f32 %v333, %v350
        %v362 = vadd.f32 %v334, %v350
        %v363 = vadd.f32 %v335, %v355
        %v364 = vadd.f32 %v336, %v355
        %365 = vxpose.xlu0.b32.start [1/16] %v357, 128
        %366 = vxpose.xlu0.b32.cont [2/16] %v359, 128
        %367 = vxpose.xlu0.b32.cont [3/16] %v361, 128
        %368 = vxpose.xlu0.b32.cont [4/16] %v363, 128
        %369 = vxpose.xlu0.b32.cont [5/16] 0.0, 128
        %370 = vxpose.xlu0.b32.cont [6/16] 0.0, 128
        %371 = vxpose.xlu0.b32.cont [7/16] 0.0, 128
        %372 = vxpose.xlu0.b32.cont [8/16] 0.0, 128
        %373 = vxpose.xlu0.b32.cont [9/16] 0.0, 128
        %374 = vxpose.xlu0.b32.cont [10/16] 0.0, 128
        %375 = vxpose.xlu0.b32.cont [11/16] 0.0, 128
        %376 = vxpose.xlu0.b32.cont [12/16] 0.0, 128
        %377 = vxpose.xlu0.b32.cont [13/16] 0.0, 128
        %378 = vxpose.xlu0.b32.cont [14/16] 0.0, 128
        %379 = vxpose.xlu0.b32.cont [15/16] 0.0, 128
        %380 = vxpose.xlu0.b32.end [16/16] 0.0, 128
        %v381 = vpop.trf.xlu0
        %v382 = vpop.trf.xlu0
        %v383 = vpop.trf.xlu0
        %v384 = vpop.trf.xlu0
        %v385 = vpop.trf.xlu0
        %v386 = vpop.trf.xlu0
        %v387 = vpop.trf.xlu0
        %v388 = vpop.trf.xlu0
        %v389 = vpop.trf.xlu0
        %v390 = vpop.trf.xlu0
        %v391 = vpop.trf.xlu0
        %v392 = vpop.trf.xlu0
        %v393 = vpop.trf.xlu0
        %v394 = vpop.trf.xlu0
        %v395 = vpop.trf.xlu0
        %v396 = vpop.trf.xlu0
        %397 = vxpose.xlu0.b32.start [1/16] %v358, 128
        %398 = vxpose.xlu0.b32.cont [2/16] %v360, 128
        %399 = vxpose.xlu0.b32.cont [3/16] %v362, 128
        %400 = vxpose.xlu0.b32.cont [4/16] %v364, 128
        %401 = vxpose.xlu0.b32.cont [5/16] 0.0, 128
        %402 = vxpose.xlu0.b32.cont [6/16] 0.0, 128
        %403 = vxpose.xlu0.b32.cont [7/16] 0.0, 128
        %404 = vxpose.xlu0.b32.cont [8/16] 0.0, 128
        %405 = vxpose.xlu0.b32.cont [9/16] 0.0, 128
        %406 = vxpose.xlu0.b32.cont [10/16] 0.0, 128
        %407 = vxpose.xlu0.b32.cont [11/16] 0.0, 128
        %408 = vxpose.xlu0.b32.cont [12/16] 0.0, 128
        %409 = vxpose.xlu0.b32.cont [13/16] 0.0, 128
        %410 = vxpose.xlu0.b32.cont [14/16] 0.0, 128
        %411 = vxpose.xlu0.b32.cont [15/16] 0.0, 128
        %412 = vxpose.xlu0.b32.end [16/16] 0.0, 128
        %v413 = vpop.trf.xlu0
        %v414 = vpop.trf.xlu0
        %v415 = vpop.trf.xlu0
        %v416 = vpop.trf.xlu0
        %v417 = vpop.trf.xlu0
        %v418 = vpop.trf.xlu0
        %v419 = vpop.trf.xlu0
        %v420 = vpop.trf.xlu0
        %v421 = vpop.trf.xlu0
        %v422 = vpop.trf.xlu0
        %v423 = vpop.trf.xlu0
        %v424 = vpop.trf.xlu0
        %v425 = vpop.trf.xlu0
        %v426 = vpop.trf.xlu0
        %v427 = vpop.trf.xlu0
        %v428 = vpop.trf.xlu0
        %vm429 = vcmask 261120
        %430 = vst.msk [vmem:[%s217] sm:$0xff] %vm429, %v381
        %431 = vst.msk [vmem:[%s217 + $0x8] sm:$0xff] %vm429, %v382
        %432 = vst.msk [vmem:[%s217 + $0x10] sm:$0xff] %vm429, %v383
        %433 = vst.msk [vmem:[%s217 + $0x18] sm:$0xff] %vm429, %v384
        %434 = vst.msk [vmem:[%s217 + $0x20] sm:$0xff] %vm429, %v385
        %435 = vst.msk [vmem:[%s217 + $0x28] sm:$0xff] %vm429, %v386
        %436 = vst.msk [vmem:[%s217 + $0x30] sm:$0xff] %vm429, %v387
        %437 = vst.msk [vmem:[%s217 + $0x38] sm:$0xff] %vm429, %v388
        %438 = vst.msk [vmem:[%s217 + $0x40] sm:$0xff] %vm429, %v389
        %439 = vst.msk [vmem:[%s217 + $0x48] sm:$0xff] %vm429, %v390
        %440 = vst.msk [vmem:[%s217 + $0x50] sm:$0xff] %vm429, %v391
        %441 = vst.msk [vmem:[%s217 + $0x58] sm:$0xff] %vm429, %v392
        %442 = vst.msk [vmem:[%s217 + $0x60] sm:$0xff] %vm429, %v393
        %443 = vst.msk [vmem:[%s217 + $0x68] sm:$0xff] %vm429, %v394
        %444 = vst.msk [vmem:[%s217 + $0x70] sm:$0xff] %vm429, %v395
        %445 = vst.msk [vmem:[%s217 + $0x78] sm:$0xff] %vm429, %v396
        %446 = vst.msk [vmem:[%s217 + $0x80] sm:$0xff] %vm429, %v413
        %447 = vst.msk [vmem:[%s217 + $0x88] sm:$0xff] %vm429, %v414
        %448 = vst.msk [vmem:[%s217 + $0x90] sm:$0xff] %vm429, %v415
        %449 = vst.msk [vmem:[%s217 + $0x98] sm:$0xff] %vm429, %v416
        %450 = vst.msk [vmem:[%s217 + $0xa0] sm:$0xff] %vm429, %v417
        %451 = vst.msk [vmem:[%s217 + $0xa8] sm:$0xff] %vm429, %v418
        %452 = vst.msk [vmem:[%s217 + $0xb0] sm:$0xff] %vm429, %v419
        %453 = vst.msk [vmem:[%s217 + $0xb8] sm:$0xff] %vm429, %v420
        %454 = vst.msk [vmem:[%s217 + $0xc0] sm:$0xff] %vm429, %v421
        %455 = vst.msk [vmem:[%s217 + $0xc8] sm:$0xff] %vm429, %v422
        %456 = vst.msk [vmem:[%s217 + $0xd0] sm:$0xff] %vm429, %v423
        %457 = vst.msk [vmem:[%s217 + $0xd8] sm:$0xff] %vm429, %v424
        %458 = vst.msk [vmem:[%s217 + $0xe0] sm:$0xff] %vm429, %v425
        %459 = vst.msk [vmem:[%s217 + $0xe8] sm:$0xff] %vm429, %v426
        %460 = vst.msk [vmem:[%s217 + $0xf0] sm:$0xff] %vm429, %v427
        %461 = vst.msk [vmem:[%s217 + $0xf8] sm:$0xff] %vm429, %v428
        %s462 = smul.u32 32, %s22
        %p463 = scmp.lt.s32.totalorder %s21, 1
        %s464 = scalar_select %p463, %s21, 1
        %p465 = scmp.lt.s32.totalorder %s462, 31
        %s466 = scalar_select %p465, %s462, 31
        %s467 = smul.addr %s464, 32
        %s468 = sadd.s32 %s466, %s467
        %s469 = smul.addr %s468, 8
        %s470 = scalar_lea.vmem %s3, %s469
        // Predicated region
        $region37: #{tpu_custom_call.1} parent=31 // pred_check
          %p471 = pneg %p119
        $region38: #{tpu_custom_call.1} parent=31 // pred_check_branch
          %473 = sbr.rel (%p471) target = $region40
        $region39: #{tpu_custom_call.1} parent=31 // pred_region
          %s474 = smul.u32 32, %s22
        $region40: #{tpu_custom_call.1} parent=31 // pred_fallthru
          _
      $region32: #{tpu_custom_call.1} parent=5 // pred_fallthru
        _
      %p475 = scmp.le.s32.totalorder 2, %s12
      // Predicated region
      $region41: #{tpu_custom_call.1} parent=5 // pred_check
        %p476 = pneg %p475
      $region42: #{tpu_custom_call.1} parent=5 // pred_check_branch
        %478 = sbr.rel (%p476) target = $region44
      $region43: #{tpu_custom_call.1} parent=5 // pred_region
        %s479 = ssub.s32 %s12, 2
        // Predicated region
        $region45: #{tpu_custom_call.1} parent=43 // pred_check
          %p480 = pneg %p125
        $region46: #{tpu_custom_call.1} parent=43 // pred_check_branch
          %482 = sbr.rel (%p480) target = $region48
        $region47: #{tpu_custom_call.1} parent=43 // pred_region
          %s483 = smul.u32 32, %s24
          %p484 = scmp.lt.s32.totalorder %s23, 1
          %s485 = scalar_select %p484, %s23, 1
          %p486 = scmp.lt.s32.totalorder %s483, 31
          %s487 = scalar_select %p486, %s483, 31
          %s488 = smul.addr %s485, 32
          %s489 = sadd.s32 %s487, %s488
          %s490 = smul.addr %s489, 8
          %s491 = scalar_lea.vmem %s3, %s490
        $region48: #{tpu_custom_call.1} parent=43 // pred_fallthru
          _
      $region44: #{tpu_custom_call.1} parent=5 // pred_fallthru
        _
    $region6: #{tpu_custom_call.1} parent=1 // loop_footer
      %s16 = sadd.s32 1, %s12
    $region7: #{tpu_custom_call.1} parent=1 // loop_footer_branch
      %11 = sbr.rel target = $region3
    $region8: #{tpu_custom_call.1} parent=1 // loop_exit
      _
    %492 = vsyncpa [#allocation3], 1
    %s493 = scalar_lea.sflag [#allocation3], 1
    %494 = vsyncpa %s493, 1

</llo_original>
